<compile_context>
chip_gen: v6e
topology: v6e:2x2x1
jax: 0.10.0
libtpu: 0.0.40
codegen_flags: <defaults>
</compile_context>

<pallas_src>
import jax
import jax.numpy as jnp
from jax.experimental import pallas as pl
from jax.experimental.pallas import tpu as pltpu


def _round_up(v, m):
    return ((v + m - 1) // m) * m


def _vmem_capacity_bytes():
    try:
        info = pltpu.get_tpu_info()
        cap = getattr(info, "vmem_capacity_bytes", None)
        if cap:
            return int(cap)
    except Exception:
        pass
    return 64 << 20  # conservative fallback: v7x per-TensorCore VMEM


def _tile_limits():
    cap = _vmem_capacity_bytes()
    if cap >= (100 << 20):  # v5e / v6e: 128 MiB VMEM per core -> go big
        return dict(max_tm=512, max_tn=1024, max_tk=2048, vmem_cap=96 << 20)
    # v7x: 64 MiB VMEM per TensorCore -> keep the double-buffered footprint small
    return dict(max_tm=256, max_tn=512, max_tk=1024, vmem_cap=48 << 20)


def _pick_tile(dim_pad128, max_tile):
    """Largest multiple-of-128 divisor of dim_pad128 that is <= max_tile."""
    start = min(max_tile, dim_pad128)
    start -= start % 128
    for cand in range(start, 127, -128):
        if dim_pad128 % cand == 0:
            return cand
    return 128


# -----------------------------------------------------------------------------
# Kernel body: one (tm, tn) output tile, K reduction over the grid's last axis.
#   base: acc += x_tile @ wt_tile                    (MXU, bf16 in, f32 accumulate)
#   k == last: out = acc + xa_tile @ bt_tile         (scale already folded into xa)
# xa = x @ (scale*(A*E)).T is precomputed in the wrapper (depends only on (i, k)).
# -----------------------------------------------------------------------------
def _svd_linear_kernel(x_ref, xa_ref, wt_ref, bt_ref, o_ref, acc_ref):
    k = pl.program_id(2)

    @pl.when(k == 0)
    def _():
        acc_ref[...] = jnp.zeros_like(acc_ref)

    acc_ref[...] += jnp.dot(x_ref[...], wt_ref[...],
                            preferred_element_type=jnp.float32)

    @pl.when(k == pl.num_programs(2) - 1)
    def _():
        lora = jnp.dot(xa_ref[...], bt_ref[...],
                       preferred_element_type=jnp.float32)
        # Epilogue stays in f32; downcast only at the final (lane-dense) store.
        o_ref[...] = (acc_ref[...] + lora).astype(o_ref.dtype)


def pack_svd_linear_params(weight, lora_A, lora_E, lora_B, *, lora_alpha=1.0,
                           ranknum=None, compute_dtype=jnp.bfloat16,
                           max_tk=None, max_tn=None):
    """One-time preprocessing: transpose, fold LoRA scale (in f32), pad, downcast.

    Returns (wt, aet, bt, meta) where
      wt  : (K_pad, N_pad)  = padded W.T                         (compute_dtype)
      aet : (K_pad, r_pad)  = padded scale * (A * E).T           (compute_dtype)
      bt  : (r_pad, N_pad)  = padded B.T                         (compute_dtype)
    tk / tn are chosen as multiple-of-128 divisors of round_up(K|N, 128) so x is
    never padded along K per call.
    """
    N, K = weight.shape
    r = lora_A.shape[0]
    assert lora_A.shape == (r, K) and lora_E.shape == (r, 1)
    assert lora_B.shape == (N, r)
    if ranknum is None:
        ranknum = r
    scale = float(lora_alpha) / (float(ranknum) + 1e-5)

    limits = _tile_limits()
    if max_tk is None:
        max_tk = limits["max_tk"]
    if max_tn is None:
        max_tn = limits["max_tn"]

    K_pad = _round_up(K, 128)
    N_pad = _round_up(N, 128)
    tk = _pick_tile(K_pad, max_tk)
    tn = _pick_tile(N_pad, max_tn)
    r_pad = max(_round_up(r, 128), 128)   # keep the LoRA intermediate lane-dense

    f32 = jnp.float32
    # Fold the LoRA scale in f32 BEFORE the downcast (avoid compounding rounding
    # in the tiny rank factor).
    ae_scaled = (lora_A.astype(f32) * lora_E.astype(f32)) * scale

    # TODO(synk): for frozen-weight inference one could fold
    #   W_eff = W + scale * B @ (A*E)
    # offline and run a plain GEMM (drops aet/bt and the epilogue dot entirely).
    wt = jnp.zeros((K_pad, N_pad), compute_dtype).at[:K, :N].set(
        weight.T.astype(compute_dtype))
    aet = jnp.zeros((K_pad, r_pad), compute_dtype).at[:K, :r].set(
        ae_scaled.T.astype(compute_dtype))
    bt = jnp.zeros((r_pad, N_pad), compute_dtype).at[:r, :N].set(
        lora_B.T.astype(compute_dtype))
    meta = dict(K=K, N=N, K_pad=K_pad, N_pad=N_pad, tk=tk, tn=tn, r_pad=r_pad)
    return wt, aet, bt, meta


def svd_linear_pallas(x, wt, aet, bt, *, tk, tn, tm=None, out_features=None,
                      out_dtype=None):
    """y = x @ W.T + (x @ scale*(A*E).T) @ B.T with pre-packed bf16 operands."""
    M, K = x.shape
    K_pad, N_pad = wt.shape
    r_pad = aet.shape[1]
    compute_dtype = wt.dtype
    assert aet.shape[0] == K_pad and bt.shape == (r_pad, N_pad)
    assert K <= K_pad and K_pad % tk == 0 and N_pad % tn == 0

    if out_dtype is None:
        out_dtype = x.dtype

    limits = _tile_limits()
    # bf16 packs two rows per sublane -> tm must be a multiple of 16.
    sub = 16 if jnp.dtype(compute_dtype).itemsize == 2 else 8
    if tm is None:
        tm = min(_round_up(M, sub), limits["max_tm"])
    tm = _round_up(tm, sub)
    M_pad = _round_up(M, tm)

    x = x.astype(compute_dtype)
    if (M_pad, K_pad) != (M, K):
        # K_pad == K whenever K % 128 == 0 (tk chosen as a divisor at pack time),
        # so this is usually only a small M pad.
        x = jnp.pad(x, ((0, M_pad - M), (0, K_pad - K)))

    # LoRA down-projection hoisted out of the (i, j, k) grid: it depends only on
    # (i, k), so compute it once per call as a tiny XLA matmul and stream the
    # (tm, r_pad) tile into the kernel's epilogue.
    xa = jnp.dot(x, aet, preferred_element_type=jnp.float32).astype(compute_dtype)

    grid = (M_pad // tm, N_pad // tn, K_pad // tk)

    c_item = jnp.dtype(compute_dtype).itemsize
    o_item = jnp.dtype(out_dtype).itemsize
    # Double-buffered input tiles + double-buffered output tile + f32 accumulator.
    vmem_bytes = (2 * (tm * tk + tm * r_pad + tk * tn + r_pad * tn) * c_item
                  + 2 * tm * tn * o_item
                  + tm * tn * 4)
    vmem_limit = int(min(max(vmem_bytes + (4 << 20), 16 << 20),
                         limits["vmem_cap"]))

    cost = pl.CostEstimate(
        flops=2 * M_pad * N_pad * (K_pad + r_pad),   # dense path + xa @ B.T epilogue
        transcendentals=0,
        bytes_accessed=((M_pad * K_pad + M_pad * r_pad + K_pad * N_pad
                         + r_pad * N_pad) * c_item + M_pad * N_pad * o_item),
    )

    y_pad = pl.pallas_call(
        _svd_linear_kernel,
        out_shape=jax.ShapeDtypeStruct((M_pad, N_pad), out_dtype),
        grid_spec=pltpu.PrefetchScalarGridSpec(
            num_scalar_prefetch=0,
            grid=grid,
            in_specs=[
                pl.BlockSpec((tm, tk), lambda i, j, k: (i, k)),      # x
                pl.BlockSpec((tm, r_pad), lambda i, j, k: (i, 0)),   # x @ scale*(A*E).T
                pl.BlockSpec((tk, tn), lambda i, j, k: (k, j)),      # W.T
                pl.BlockSpec((r_pad, tn), lambda i, j, k: (0, j)),   # B.T
            ],
            out_specs=pl.BlockSpec((tm, tn), lambda i, j, k: (i, j)),
            scratch_shapes=[pltpu.VMEM((tm, tn), jnp.float32)],      # f32 accumulator
        ),
        compiler_params=pltpu.CompilerParams(
            dimension_semantics=("parallel", "parallel", "arbitrary"),
            vmem_limit_bytes=vmem_limit,
        ),
        cost_estimate=cost,
    )(x, xa, wt, bt)

    if out_features is None:
        out_features = N_pad
    return y_pad[:M, :out_features]


class SingleLayerModelPallas:
    """JAX/Pallas equivalent of SingleLayerModel(in_features, out_features, r)."""

    def __init__(self, in_features, out_features, r, *, lora_alpha=1.0,
                 compute_dtype=jnp.bfloat16, key=None):
        if key is None:
            key = jax.random.PRNGKey(0)
        kw, ka, ke, kb = jax.random.split(key, 4)
        self.in_features = in_features
        self.out_features = out_features
        self.r = r
        self.lora_alpha = lora_alpha
        # Deterministic synthetic init (nonzero so the low-rank path is exercised).
        # TODO(synk): AdaLoRA initializes lora_E to zeros; nonzero here exercises the full path.
        self.weight = jax.random.normal(kw, (out_features, in_features), jnp.float32) * 0.1
        self.lora_A = jax.random.normal(ka, (r, in_features), jnp.float32) * 0.1
        self.lora_E = jax.random.normal(ke, (r, 1), jnp.float32) * 0.1
        self.lora_B = jax.random.normal(kb, (out_features, r), jnp.float32) * 0.1
        # Pre-transpose / pre-scale / rank-pad / downcast ONCE, not per call.
        self.wt, self.aet, self.bt, meta = pack_svd_linear_params(
            self.weight, self.lora_A, self.lora_E, self.lora_B,
            lora_alpha=lora_alpha, ranknum=r, compute_dtype=compute_dtype)
        self.tk = meta["tk"]
        self.tn = meta["tn"]

    def __call__(self, x):
        return svd_linear_pallas(
            x, self.wt, self.aet, self.bt, tk=self.tk, tn=self.tn,
            out_features=self.out_features)


if __name__ == "__main__":
    key = jax.random.PRNGKey(0)
    kx, kp, k2 = jax.random.split(key, 3)

    # --- Toy shapes matching the original module usage -----------------------
    in_features, out_features, r = 32, 32, 4
    batch = 8
    x = jax.random.normal(kx, (batch, in_features), jnp.float32)
    model = SingleLayerModelPallas(in_features, out_features, r, key=kp)
    y = jax.block_until_ready(model(x))

    scale = model.lora_alpha / (model.r + 1e-5)
    ref = (x @ model.weight.T
           + (x @ (model.lora_A * model.lora_E).T @ model.lora_B.T) * scale)
    assert y.shape == (batch, out_features)
    assert y.dtype == x.dtype
    err = float(jnp.max(jnp.abs(y - ref)))
    # bf16 operands, f32 accumulation -> compare against f32 reference loosely.
    assert jnp.allclose(y, ref, atol=5e-2, rtol=5e-2), err

    # --- Multi-tile sanity check (small shapes, forced tiny tiles) -----------
    # Exercises the full (M, N, K) grid, the K-reduction accumulator and the
    # hoisted-xa epilogue across multiple N tiles.
    M2, K2, N2, r2 = 16, 256, 256, 4
    kw2, ka2, ke2, kb2, kx2 = jax.random.split(k2, 5)
    w2 = jax.random.normal(kw2, (N2, K2), jnp.float32) * 0.05
    a2 = jax.random.normal(ka2, (r2, K2), jnp.float32) * 0.05
    e2 = jax.random.normal(ke2, (r2, 1), jnp.float32) * 0.05
    b2 = jax.random.normal(kb2, (N2, r2), jnp.float32) * 0.05
    x2 = jax.random.normal(kx2, (M2, K2), jnp.float32)
    wt2, aet2, bt2, meta2 = pack_svd_linear_params(
        w2, a2, e2, b2, lora_alpha=2.0, ranknum=r2, max_tk=128, max_tn=128)
    y2 = jax.block_until_ready(
        svd_linear_pallas(x2, wt2, aet2, bt2, tk=meta2["tk"], tn=meta2["tn"],
                          tm=16, out_features=N2))
    s2 = 2.0 / (r2 + 1e-5)
    ref2 = x2 @ w2.T + (x2 @ (a2 * e2).T @ b2.T) * s2
    err2 = float(jnp.max(jnp.abs(y2 - ref2)))
    assert jnp.allclose(y2, ref2, atol=8e-2, rtol=5e-2), err2

    print("KERNEL_OK")
</pallas_src>

<mosaic_0001>
module attributes {stable_mosaic.version = 11 : i64} {
  func.func @_svd_linear_kernel(%arg0: i32, %arg1: i32, %arg2: i32, %arg3: memref<16x128xbf16, #tpu.memory_space<vmem>>, %arg4: memref<16x128xbf16, #tpu.memory_space<vmem>>, %arg5: memref<128x128xbf16, #tpu.memory_space<vmem>>, %arg6: memref<128x128xbf16, #tpu.memory_space<vmem>>, %arg7: memref<16x128xf32, #tpu.memory_space<vmem>>, %arg8: memref<16x128xf32, #tpu.memory_space<vmem>>) attributes {dimension_semantics = [#tpu.dimension_semantics<parallel>, #tpu.dimension_semantics<parallel>, #tpu.dimension_semantics<arbitrary>], iteration_bounds = array<i64: 1, 1, 1>, scalar_prefetch = 0 : i64, scratch_operands = 1 : i64, tpu.core_type = #tpu.core_type<tc>, window_params = [{transform_indices = @transform_0, window_bounds = array<i64: 16, 128>}, {transform_indices = @transform_1, window_bounds = array<i64: 16, 128>}, {transform_indices = @transform_2, window_bounds = array<i64: 128, 128>}, {transform_indices = @transform_3, window_bounds = array<i64: 128, 128>}, {transform_indices = @transform_4, window_bounds = array<i64: 16, 128>}]} {
    %c0_i32 = arith.constant 0 : i32
    %0 = arith.cmpi eq, %arg2, %c0_i32 : i32
    %1 = arith.extui %0 : i1 to i32
    %c0_i32_0 = arith.constant 0 : i32
    %2 = arith.cmpi ne, %1, %c0_i32_0 : i32
    scf.if %2 {
      %cst_10 = arith.constant 0.000000e+00 : f32
      %12 = vector.broadcast %cst_10 : f32 to vector<16x128xf32>
      %c0_11 = arith.constant 0 : index
      %c0_12 = arith.constant 0 : index
      %13 = vector.load %arg8[%c0_11, %c0_12] : memref<16x128xf32, #tpu.memory_space<vmem>>, vector<16x128xf32>
      tpu.vector_store %arg8[%c0_11, %c0_12], %12 {strides = array<i32>} : memref<16x128xf32, #tpu.memory_space<vmem>>, vector<16x128xf32>,
    } else {
    }
    %c0 = arith.constant 0 : index
    %c0_1 = arith.constant 0 : index
    %3 = vector.load %arg8[%c0, %c0_1] : memref<16x128xf32, #tpu.memory_space<vmem>>, vector<16x128xf32>
    %c0_2 = arith.constant 0 : index
    %c0_3 = arith.constant 0 : index
    %4 = vector.load %arg3[%c0_2, %c0_3] : memref<16x128xbf16, #tpu.memory_space<vmem>>, vector<16x128xbf16>
    %c0_4 = arith.constant 0 : index
    %c0_5 = arith.constant 0 : index
    %5 = vector.load %arg5[%c0_4, %c0_5] : memref<128x128xbf16, #tpu.memory_space<vmem>>, vector<128x128xbf16>
    %cst = arith.constant dense<0.000000e+00> : vector<16x128xf32>
    %6 = tpu.matmul %4, %5, %cst {dimension_numbers = #tpu.dot_dimension_numbers<[1], [0], [0], [1], [0, 0, 1, 1], [], []>} : vector<16x128xbf16>, vector<128x128xbf16>, vector<16x128xf32> -> vector<16x128xf32>
    %7 = arith.addf %3, %6 : vector<16x128xf32>
    %c0_6 = arith.constant 0 : index
    %c0_7 = arith.constant 0 : index
    %8 = vector.load %arg8[%c0_6, %c0_7] : memref<16x128xf32, #tpu.memory_space<vmem>>, vector<16x128xf32>
    tpu.vector_store %arg8[%c0_6, %c0_7], %7 {strides = array<i32>} : memref<16x128xf32, #tpu.memory_space<vmem>>, vector<16x128xf32>,
    %c0_i32_8 = arith.constant 0 : i32
    %9 = arith.cmpi eq, %arg2, %c0_i32_8 : i32
    %10 = arith.extui %9 : i1 to i32
    %c0_i32_9 = arith.constant 0 : i32
    %11 = arith.cmpi ne, %10, %c0_i32_9 : i32
    scf.if %11 {
      %c0_10 = arith.constant 0 : index
      %c0_11 = arith.constant 0 : index
      %12 = vector.load %arg4[%c0_10, %c0_11] : memref<16x128xbf16, #tpu.memory_space<vmem>>, vector<16x128xbf16>
      %c0_12 = arith.constant 0 : index
      %c0_13 = arith.constant 0 : index
      %13 = vector.load %arg6[%c0_12, %c0_13] : memref<128x128xbf16, #tpu.memory_space<vmem>>, vector<128x128xbf16>
      %cst_14 = arith.constant dense<0.000000e+00> : vector<16x128xf32>
      %14 = tpu.matmul %12, %13, %cst_14 {dimension_numbers = #tpu.dot_dimension_numbers<[1], [0], [0], [1], [0, 0, 1, 1], [], []>} : vector<16x128xbf16>, vector<128x128xbf16>, vector<16x128xf32> -> vector<16x128xf32>
      %c0_15 = arith.constant 0 : index
      %c0_16 = arith.constant 0 : index
      %15 = vector.load %arg8[%c0_15, %c0_16] : memref<16x128xf32, #tpu.memory_space<vmem>>, vector<16x128xf32>
      %16 = arith.addf %15, %14 : vector<16x128xf32>
      %c0_17 = arith.constant 0 : index
      %c0_18 = arith.constant 0 : index
      %17 = vector.load %arg7[%c0_17, %c0_18] : memref<16x128xf32, #tpu.memory_space<vmem>>, vector<16x128xf32>
      tpu.vector_store %arg7[%c0_17, %c0_18], %16 {strides = array<i32>} : memref<16x128xf32, #tpu.memory_space<vmem>>, vector<16x128xf32>,
    } else {
    }
    return
  }
  func.func @transform_0(%arg0: i32, %arg1: i32, %arg2: i32) -> (i32, i32) {
    %c0_i32 = arith.constant 0 : i32
    return %arg0, %arg2 : i32, i32
  }
  func.func @transform_1(%arg0: i32, %arg1: i32, %arg2: i32) -> (i32, i32) {
    %c0_i32 = arith.constant 0 : i32
    %c0_i32_0 = arith.constant 0 : i32
    return %arg0, %c0_i32 : i32, i32
  }
  func.func @transform_2(%arg0: i32, %arg1: i32, %arg2: i32) -> (i32, i32) {
    %c0_i32 = arith.constant 0 : i32
    return %arg2, %arg1 : i32, i32
  }
  func.func @transform_3(%arg0: i32, %arg1: i32, %arg2: i32) -> (i32, i32) {
    %c0_i32 = arith.constant 0 : i32
    %c0_i32_0 = arith.constant 0 : i32
    return %c0_i32, %arg1 : i32, i32
  }
  func.func @transform_4(%arg0: i32, %arg1: i32, %arg2: i32) -> (i32, i32) {
    %c0_i32 = arith.constant 0 : i32
    return %arg0, %arg1 : i32, i32
  }
}

</mosaic_0001>

<llo_original>
// kernel: tpu_custom_call.1
$region0: #{tpu_custom_call.1}
  #allocation0 [shape = 'u32[]', space=smem, size = 0x4, offset = 0x4, fixed_abs, tag = 'smem constant byte address 0x4 - core index']
  #allocation1 [shape = 'u32[144,128]{1,0:T(1,128)}', space=vmem, size = 0x12000, scoped, tag = 'internal scratch']
  #allocation2 [shape = 'f32[16,128]{1,0:T(8,128)}', space=vmem, size = 0x2000, scoped, tag = 'scratch operand']
  %s0 = inlined_call_operand.hbm [shape: bf16[16,128], index: 0, kind: input, shape index: {}]
  %s1 = inlined_call_operand.hbm [shape: bf16[16,128], index: 1, kind: input, shape index: {}]
  %s2 = inlined_call_operand.hbm [shape: bf16[128,128], index: 2, kind: input, shape index: {}]
  %s3 = inlined_call_operand.hbm [shape: bf16[128,128], index: 3, kind: input, shape index: {}]
  %s4 = inlined_call_operand.hbm [shape: f32[16,128], index: 4, kind: output, shape index: {}]
  %s5 = sld [smem:[#allocation0]]
  $region50: #{tpu_custom_call.1} parent=0
    _
  %s7 = ssub.s32 1, %s5
  %s8 = scalar_select 0, %s7, %s5
  $region1: #{tpu_custom_call.1} parent=0
    #allocation3 [shape = 'u8[4096]{0}', space=vmem, size = 0x1000, scoped, tag = 'input window, operand 0, single buffered']
    #allocation4 [shape = 's32[1]{0}', space=sflag, size = 0x4, scoped, tag = 'scoped memory for tpu_custom_call.1']
    #allocation5 [shape = 's32[1]{0}', space=sflag, size = 0x4, scoped, tag = 'scoped memory for tpu_custom_call.1']
    #allocation6 [shape = 'u8[4096]{0}', space=vmem, size = 0x1000, scoped, tag = 'input window, operand 1, single buffered']
    #allocation7 [shape = 's32[1]{0}', space=sflag, size = 0x4, scoped, tag = 'scoped memory for tpu_custom_call.1']
    #allocation8 [shape = 'u8[32768]{0}', space=vmem, size = 0x8000, scoped, tag = 'input window, operand 2, single buffered']
    #allocation9 [shape = 'u8[32768]{0}', space=vmem, size = 0x8000, scoped, tag = 'input window, operand 3, single buffered']
    #allocation10 [shape = 's32[1]{0}', space=sflag, size = 0x4, scoped, tag = 'scoped memory for tpu_custom_call.1']
    #allocation11 [shape = 'u8[8192]{0}', space=vmem, size = 0x2000, scoped, tag = 'output window, operand 0, single buffered']
    %9 = vsyncpa [#allocation4], 0
    %10 = vsyncpa [#allocation7], 0
    %11 = vsyncpa [#allocation10], 0
    %12 = vsyncpa [#allocation5], 0
    // Predicated region
    $region2: #{tpu_custom_call.1} parent=1 // pred_check
      _
    $region3: #{tpu_custom_call.1} parent=1 // pred_check_branch
      %14 = sbr.rel (0) target = $region5
    $region4: #{tpu_custom_call.1} parent=1 // pred_region
      %s16 = ssub.s32 128, 128
      %17 = vsyncadd [#allocation4], %s16
      %s18 = sshll.u32 [#allocation3], 4
      %s19 = int_to_ptr.vmem [resolvable:$true] %s18
      %24 = dma.hbm_to_vmem [thread:$0]  %s0, 128, %s19, [#allocation4], 64, 64, 4
    $region5: #{tpu_custom_call.1} parent=1 // pred_fallthru
      _
    // Predicated region
    $region6: #{tpu_custom_call.1} parent=1 // pred_check
      _
    $region7: #{tpu_custom_call.1} parent=1 // pred_check_branch
      %26 = sbr.rel (0) target = $region9
    $region8: #{tpu_custom_call.1} parent=1 // pred_region
      %s28 = ssub.s32 128, 128
      %29 = vsyncadd [#allocation7], %s28
      %s30 = sshll.u32 [#allocation6], 4
      %s31 = int_to_ptr.vmem [resolvable:$true] %s30
      %36 = dma.hbm_to_vmem [thread:$0]  %s1, 128, %s31, [#allocation7], 64, 64, 4
    $region9: #{tpu_custom_call.1} parent=1 // pred_fallthru
      _
    // Predicated region
    $region10: #{tpu_custom_call.1} parent=1 // pred_check
      _
    $region11: #{tpu_custom_call.1} parent=1 // pred_check_branch
      %38 = sbr.rel (0) target = $region13
    $region12: #{tpu_custom_call.1} parent=1 // pred_region
      %s40 = ssub.s32 1024, 1024
      %41 = vsyncadd [#allocation7], %s40
      %s42 = sshll.u32 [#allocation8], 4
      %s43 = int_to_ptr.vmem [resolvable:$true] %s42
      %48 = dma.hbm_to_vmem [thread:$0]  %s2, 1024, %s43, [#allocation7], 64, 64, 4
    $region13: #{tpu_custom_call.1} parent=1 // pred_fallthru
      _
    // Predicated region
    $region14: #{tpu_custom_call.1} parent=1 // pred_check
      _
    $region15: #{tpu_custom_call.1} parent=1 // pred_check_branch
      %50 = sbr.rel (0) target = $region17
    $region16: #{tpu_custom_call.1} parent=1 // pred_region
      %s52 = ssub.s32 1024, 1024
      %53 = vsyncadd [#allocation10], %s52
      %s54 = sshll.u32 [#allocation9], 4
      %s55 = int_to_ptr.vmem [resolvable:$true] %s54
      %60 = dma.hbm_to_vmem [thread:$0]  %s3, 1024, %s55, [#allocation10], 64, 64, 4
    $region17: #{tpu_custom_call.1} parent=1 // pred_fallthru
      _
    // Predicated region
    $region18: #{tpu_custom_call.1} parent=1 // pred_check
      _
    $region19: #{tpu_custom_call.1} parent=1 // pred_check_branch
      %62 = sbr.rel (0) target = $region21
    $region20: #{tpu_custom_call.1} parent=1 // pred_region
      %63 = dma.done [#allocation4], 128
    $region21: #{tpu_custom_call.1} parent=1 // pred_fallthru
      _
    // Predicated region
    $region22: #{tpu_custom_call.1} parent=1 // pred_check
      _
    $region23: #{tpu_custom_call.1} parent=1 // pred_check_branch
      %65 = sbr.rel (0) target = $region25
    $region24: #{tpu_custom_call.1} parent=1 // pred_region
      %66 = dma.done [#allocation7], 128
    $region25: #{tpu_custom_call.1} parent=1 // pred_fallthru
      _
    // Predicated region
    $region26: #{tpu_custom_call.1} parent=1 // pred_check
      _
    $region27: #{tpu_custom_call.1} parent=1 // pred_check_branch
      %68 = sbr.rel (0) target = $region29
    $region28: #{tpu_custom_call.1} parent=1 // pred_region
      %69 = dma.done [#allocation7], 1024
    $region29: #{tpu_custom_call.1} parent=1 // pred_fallthru
      _
    // Predicated region
    $region30: #{tpu_custom_call.1} parent=1 // pred_check
      _
    $region31: #{tpu_custom_call.1} parent=1 // pred_check_branch
      %71 = sbr.rel (0) target = $region33
    $region32: #{tpu_custom_call.1} parent=1 // pred_region
      %72 = dma.done [#allocation10], 1024
    $region33: #{tpu_custom_call.1} parent=1 // pred_fallthru
      _
    %p74 = scmp.eq.s32.totalorder 0, 0
    // Predicated region
    $region34: #{tpu_custom_call.1} parent=1 // pred_check
      %p75 = pneg %p74
    $region35: #{tpu_custom_call.1} parent=1 // pred_check_branch
      %77 = sbr.rel (%p75) target = $region37
    $region36: #{tpu_custom_call.1} parent=1 // pred_region
      %78 = vst [vmem:[#allocation2] sm:$0xff] 0.0
      %79 = vst [vmem:[#allocation2 + $0x8] sm:$0xff] 0.0
    $region37: #{tpu_custom_call.1} parent=1 // pred_fallthru
      _
    %v80 = vld [vmem:[#allocation2] sm:$0xff]
    %v81 = vld [vmem:[#allocation2 + $0x8] sm:$0xff]
    %v82 = vld [vmem:[#allocation3] sm:$0xf]
    %v83 = vld [vmem:[#allocation3 + $0x4] sm:$0xf]
    %v84 = vld [vmem:[#allocation8] sm:$0xf]
    %v85 = vld [vmem:[#allocation8 + $0x4] sm:$0xf]
    %v86 = vld [vmem:[#allocation8 + $0x8] sm:$0xf]
    %v87 = vld [vmem:[#allocation8 + $0xc] sm:$0xf]
    %v88 = vld [vmem:[#allocation8 + $0x10] sm:$0xf]
    %v89 = vld [vmem:[#allocation8 + $0x14] sm:$0xf]
    %v90 = vld [vmem:[#allocation8 + $0x18] sm:$0xf]
    %v91 = vld [vmem:[#allocation8 + $0x1c] sm:$0xf]
    %v92 = vld [vmem:[#allocation8 + $0x20] sm:$0xf]
    %v93 = vld [vmem:[#allocation8 + $0x24] sm:$0xf]
    %v94 = vld [vmem:[#allocation8 + $0x28] sm:$0xf]
    %v95 = vld [vmem:[#allocation8 + $0x2c] sm:$0xf]
    %v96 = vld [vmem:[#allocation8 + $0x30] sm:$0xf]
    %v97 = vld [vmem:[#allocation8 + $0x34] sm:$0xf]
    %v98 = vld [vmem:[#allocation8 + $0x38] sm:$0xf]
    %v99 = vld [vmem:[#allocation8 + $0x3c] sm:$0xf]
    %v102 = vunpack.c.l.b16 %v82
    %v103 = vunpack.c.l.b16 %v83
    %v104 = vpack.c.b16 %v103, %v102
    %v122 = vunpack.c.l.b16 %v84
    %v123 = vunpack.c.l.b16 %v85
    %v124 = vunpack.c.l.b16 %v86
    %v125 = vunpack.c.l.b16 %v87
    %v126 = vunpack.c.l.b16 %v88
    %v127 = vunpack.c.l.b16 %v89
    %v128 = vunpack.c.l.b16 %v90
    %v129 = vunpack.c.l.b16 %v91
    %v130 = vunpack.c.l.b16 %v92
    %v131 = vunpack.c.l.b16 %v93
    %v132 = vunpack.c.l.b16 %v94
    %v133 = vunpack.c.l.b16 %v95
    %v134 = vunpack.c.l.b16 %v96
    %v135 = vunpack.c.l.b16 %v97
    %v136 = vunpack.c.l.b16 %v98
    %v137 = vunpack.c.l.b16 %v99
    %v138 = vpack.c.b16 %v123, %v122
    %v139 = vpack.c.b16 %v125, %v124
    %v140 = vpack.c.b16 %v127, %v126
    %v141 = vpack.c.b16 %v129, %v128
    %v142 = vpack.c.b16 %v131, %v130
    %v143 = vpack.c.b16 %v133, %v132
    %v144 = vpack.c.b16 %v135, %v134
    %v145 = vpack.c.b16 %v137, %v136
    %154 = vmatprep.subr.bf16.mxu0 0
    %155 = vmatpush1.bf16.msra.mxu0 %v145
    %156 = vmatprep.subr.bf16.mxu0 0
    %157 = vmatpush1.bf16.msra.mxu0 %v144
    %158 = vmatprep.subr.bf16.mxu0 0
    %159 = vmatpush1.bf16.msra.mxu0 %v143
    %160 = vmatprep.subr.bf16.mxu0 0
    %161 = vmatpush1.bf16.msra.mxu0 %v142
    %162 = vmatprep.subr.bf16.mxu0 0
    %163 = vmatpush1.bf16.msra.mxu0 %v141
    %164 = vmatprep.subr.bf16.mxu0 0
    %165 = vmatpush1.bf16.msra.mxu0 %v140
    %166 = vmatprep.subr.bf16.mxu0 0
    %167 = vmatpush1.bf16.msra.mxu0 %v139
    %168 = vmatprep.subr.bf16.mxu0 0
    %169 = vmatpush1.bf16.msra.mxu0 %v138
    %170 = vmatprep.subr.bf16.mxu0 0
    %171 = vmatpush2.bf16.msra.mxu0 0
    %172 = vmatprep.subr.bf16.mxu0 0
    %173 = vmatpush2.bf16.msra.mxu0 0
    %174 = vmatprep.subr.bf16.mxu0 0
    %175 = vmatpush2.bf16.msra.mxu0 0
    %176 = vmatprep.subr.bf16.mxu0 0
    %177 = vmatpush2.bf16.msra.mxu0 0
    %178 = vmatprep.subr.bf16.mxu0 0
    %179 = vmatpush2.bf16.msra.mxu0 0
    %180 = vmatprep.subr.bf16.mxu0 0
    %181 = vmatpush2.bf16.msra.mxu0 0
    %182 = vmatprep.subr.bf16.mxu0 0
    %183 = vmatpush2.bf16.msra.mxu0 0
    %184 = vmatprep.subr.bf16.mxu0 0
    %185 = vmatpush2.bf16.msra.mxu0 0
    %186 = vmatprep.mubr.bf16.mxu0 0
    %187 = vmatmul.mubr.bf16.gmra.mxu0 %v104
    %v188 = vpop.f32.mrf.mxu0
    %v189 = vadd.f32 0.0, %v188
    %v190 = vpop.f32.mrf.mxu0
    %v191 = vpop.f32.mrf.mxu0
    %v192 = vadd.f32 0.0, %v191
    %v193 = vpop.f32.mrf.mxu0
    %194 = vdwg.mxu0
    %v195 = vadd.f32 %v80, %v189
    %v196 = vadd.f32 %v81, %v192
    %197 = vst [vmem:[#allocation2] sm:$0xff] %v195
    %198 = vst [vmem:[#allocation2 + $0x8] sm:$0xff] %v196
    // Predicated region
    $region38: #{tpu_custom_call.1} parent=1 // pred_check
      %p199 = pneg %p74
    $region39: #{tpu_custom_call.1} parent=1 // pred_check_branch
      %201 = sbr.rel (%p199) target = $region41
    $region40: #{tpu_custom_call.1} parent=1 // pred_region
      %v202 = vld [vmem:[#allocation6] sm:$0xf]
      %v203 = vld [vmem:[#allocation6 + $0x4] sm:$0xf]
      %v204 = vld [vmem:[#allocation9] sm:$0xf]
      %v205 = vld [vmem:[#allocation9 + $0x4] sm:$0xf]
      %v206 = vld [vmem:[#allocation9 + $0x8] sm:$0xf]
      %v207 = vld [vmem:[#allocation9 + $0xc] sm:$0xf]
      %v208 = vld [vmem:[#allocation9 + $0x10] sm:$0xf]
      %v209 = vld [vmem:[#allocation9 + $0x14] sm:$0xf]
      %v210 = vld [vmem:[#allocation9 + $0x18] sm:$0xf]
      %v211 = vld [vmem:[#allocation9 + $0x1c] sm:$0xf]
      %v212 = vld [vmem:[#allocation9 + $0x20] sm:$0xf]
      %v213 = vld [vmem:[#allocation9 + $0x24] sm:$0xf]
      %v214 = vld [vmem:[#allocation9 + $0x28] sm:$0xf]
      %v215 = vld [vmem:[#allocation9 + $0x2c] sm:$0xf]
      %v216 = vld [vmem:[#allocation9 + $0x30] sm:$0xf]
      %v217 = vld [vmem:[#allocation9 + $0x34] sm:$0xf]
      %v218 = vld [vmem:[#allocation9 + $0x38] sm:$0xf]
      %v219 = vld [vmem:[#allocation9 + $0x3c] sm:$0xf]
      %v222 = vunpack.c.l.b16 %v202
      %v223 = vunpack.c.l.b16 %v203
      %v224 = vpack.c.b16 %v223, %v222
      %v242 = vunpack.c.l.b16 %v204
      %v243 = vunpack.c.l.b16 %v205
      %v244 = vunpack.c.l.b16 %v206
      %v245 = vunpack.c.l.b16 %v207
      %v246 = vunpack.c.l.b16 %v208
      %v247 = vunpack.c.l.b16 %v209
      %v248 = vunpack.c.l.b16 %v210
      %v249 = vunpack.c.l.b16 %v211
      %v250 = vunpack.c.l.b16 %v212
      %v251 = vunpack.c.l.b16 %v213
      %v252 = vunpack.c.l.b16 %v214
      %v253 = vunpack.c.l.b16 %v215
      %v254 = vunpack.c.l.b16 %v216
      %v255 = vunpack.c.l.b16 %v217
      %v256 = vunpack.c.l.b16 %v218
      %v257 = vunpack.c.l.b16 %v219
      %v258 = vpack.c.b16 %v243, %v242
      %v259 = vpack.c.b16 %v245, %v244
      %v260 = vpack.c.b16 %v247, %v246
      %v261 = vpack.c.b16 %v249, %v248
      %v262 = vpack.c.b16 %v251, %v250
      %v263 = vpack.c.b16 %v253, %v252
      %v264 = vpack.c.b16 %v255, %v254
      %v265 = vpack.c.b16 %v257, %v256
      %274 = vmatprep.subr.bf16.mxu0 0
      %275 = vmatpush1.bf16.msra.mxu0 %v265
      %276 = vmatprep.subr.bf16.mxu0 0
      %277 = vmatpush1.bf16.msra.mxu0 %v264
      %278 = vmatprep.subr.bf16.mxu0 0
      %279 = vmatpush1.bf16.msra.mxu0 %v263
      %280 = vmatprep.subr.bf16.mxu0 0
      %281 = vmatpush1.bf16.msra.mxu0 %v262
      %282 = vmatprep.subr.bf16.mxu0 0
      %283 = vmatpush1.bf16.msra.mxu0 %v261
      %284 = vmatprep.subr.bf16.mxu0 0
      %285 = vmatpush1.bf16.msra.mxu0 %v260
      %286 = vmatprep.subr.bf16.mxu0 0
      %287 = vmatpush1.bf16.msra.mxu0 %v259
      %288 = vmatprep.subr.bf16.mxu0 0
      %289 = vmatpush1.bf16.msra.mxu0 %v258
      %290 = vmatprep.subr.bf16.mxu0 0
      %291 = vmatpush2.bf16.msra.mxu0 0
      %292 = vmatprep.subr.bf16.mxu0 0
      %293 = vmatpush2.bf16.msra.mxu0 0
      %294 = vmatprep.subr.bf16.mxu0 0
      %295 = vmatpush2.bf16.msra.mxu0 0
      %296 = vmatprep.subr.bf16.mxu0 0
      %297 = vmatpush2.bf16.msra.mxu0 0
      %298 = vmatprep.subr.bf16.mxu0 0
      %299 = vmatpush2.bf16.msra.mxu0 0
      %300 = vmatprep.subr.bf16.mxu0 0
      %301 = vmatpush2.bf16.msra.mxu0 0
      %302 = vmatprep.subr.bf16.mxu0 0
      %303 = vmatpush2.bf16.msra.mxu0 0
      %304 = vmatprep.subr.bf16.mxu0 0
      %305 = vmatpush2.bf16.msra.mxu0 0
      %306 = vmatprep.mubr.bf16.mxu0 0
      %307 = vmatmul.mubr.bf16.gmra.mxu0 %v224
      %v308 = vpop.f32.mrf.mxu0
      %v309 = vadd.f32 0.0, %v308
      %v310 = vpop.f32.mrf.mxu0
      %v311 = vpop.f32.mrf.mxu0
      %v312 = vadd.f32 0.0, %v311
      %v313 = vpop.f32.mrf.mxu0
      %314 = vdwg.mxu0
      %v315 = vld [vmem:[#allocation2] sm:$0xff]
      %v316 = vld [vmem:[#allocation2 + $0x8] sm:$0xff]
      %v317 = vadd.f32 %v315, %v309
      %v318 = vadd.f32 %v316, %v312
      %319 = vst [vmem:[#allocation11] sm:$0xff] %v317
      %320 = vst [vmem:[#allocation11 + $0x8] sm:$0xff] %v318
    $region41: #{tpu_custom_call.1} parent=1 // pred_fallthru
      _
    // Predicated region
    $region42: #{tpu_custom_call.1} parent=1 // pred_check
      _
    $region43: #{tpu_custom_call.1} parent=1 // pred_check_branch
      %322 = sbr.rel (0) target = $region45
    $region44: #{tpu_custom_call.1} parent=1 // pred_region
      %s324 = ssub.s32 256, 256
      %325 = vsyncadd [#allocation5], %s324
      %s326 = sshll.u32 [#allocation11], 4
      %s327 = int_to_ptr.vmem [resolvable:$true] %s326
      %332 = dma.vmem_to_hbm [thread:$0]  %s327, 256, %s4, [#allocation5], 128, 128, 8
    $region45: #{tpu_custom_call.1} parent=1 // pred_fallthru
      _
    // Predicated region
    $region46: #{tpu_custom_call.1} parent=1 // pred_check
      _
    $region47: #{tpu_custom_call.1} parent=1 // pred_check_branch
      %334 = sbr.rel (0) target = $region49
    $region48: #{tpu_custom_call.1} parent=1 // pred_region
      %335 = dma.done [#allocation5], 256
    $region49: #{tpu_custom_call.1} parent=1 // pred_fallthru
      _
    %336 = vsyncpa [#allocation4], 1
    %337 = vsyncpa [#allocation7], 1
    %338 = vsyncpa [#allocation10], 1
    %339 = vsyncpa [#allocation5], 1

</llo_original>
